<compile_context>
chip_gen: v5e
topology: v5e:2x2
jax: 0.10.0
libtpu: 0.0.40
codegen_flags: <defaults>
</compile_context>

<pallas_src>
import functools

import jax
import jax.numpy as jnp
from jax.experimental import pallas as pl
from jax.experimental.pallas import tpu as pltpu


def _round_up(v, m):
    return (v + m - 1) // m * m


def _grad_transformer_kernel(x_dim, eps, L, TL, n_edits, sps,
                             x_ref, gamma_ref, beta_ref, cum_ref, pscale_ref,
                             xn_ref, dw_ref, db_ref,
                             dw_acc, db_acc):
    """One (TL, D) row tile of the fused LayerNorm + split + outer-product reduction.

    Grid is (n_split, sps): axis 0 ("parallel") splits the row stream across
    TensorCores (v7x), axis 1 ("arbitrary") streams row tiles; dw/db accumulate in
    f32 VMEM scratch and are written to this split's output slice on its last step.
    """
    c = pl.program_id(0)
    i = pl.program_id(1)

    # --- init accumulators on the first step of each split ---
    @pl.when(i == 0)
    def _():
        dw_acc[...] = jnp.zeros_like(dw_acc)
        db_acc[...] = jnp.zeros_like(db_acc)

    x = x_ref[...].astype(jnp.float32)          # [TL, D] (upcast in-kernel)
    D = x.shape[-1]
    inv_d = jnp.float32(1.0 / D)

    # --- nn.LayerNorm(model_dim): two-pass stats (tile is VMEM resident) ---
    mean = jnp.sum(x, axis=-1, keepdims=True) * inv_d
    xc = x - mean
    var = jnp.sum(xc * xc, axis=-1, keepdims=True) * inv_d
    xn = xc * jax.lax.rsqrt(var + eps)
    xn = xn * gamma_ref[...].astype(jnp.float32) + beta_ref[...].astype(jnp.float32)
    xn_ref[...] = xn                            # f32 output; partial last block clipped on writeback

    # Logical row ids of this step.  Fully out-of-range steps (when n_split*sps
    # overshoots the tile count) were clamped onto the last tile by the index_map;
    # their rows are >= L here so they are fully masked out.
    row_ids = (c * sps + i) * TL + jax.lax.broadcasted_iota(jnp.int32, (TL, 1), 0)
    valid = row_ids < L
    xm = jnp.where(valid, xn, 0.0)              # garbage rows (incl. NaN/Inf) -> 0

    # Per-row scale = update_scale[e] / edit_lens[e] for the edit owning the row,
    # generated from SMEM tables (no (L,1) HBM array, no lane-sparse DMA).
    scale = jnp.zeros((TL, 1), jnp.float32)
    for e in range(n_edits):                    # n_edits is static and small
        lo = cum_ref[e]
        hi = cum_ref[e + 1]
        scale = jnp.where((row_ids >= lo) & (row_ids < hi), pscale_ref[e], scale)

    # --- split, per-row scale, outer-product reduction (f32 MXU, f32 accumulate) ---
    x1 = xm[:, :x_dim]                          # [TL, x_dim]
    x2 = xm[:, x_dim:] * scale                  # [TL, delta_dim] (0 for invalid rows)

    dw_acc[...] += jax.lax.dot_general(
        x1, x2,
        dimension_numbers=(((0,), (0,)), ((), ())),   # contract over rows (L axis)
        preferred_element_type=jnp.float32)
    db_acc[...] += jnp.sum(x2, axis=0, keepdims=True)

    # --- finalize this split on its last step ---
    @pl.when(i == sps - 1)
    def _():
        dw_ref[...] = dw_acc[...].reshape(dw_ref.shape)
        db_ref[...] = db_acc[...].reshape(db_ref.shape)


class GradientTransformerPallas:
    def __init__(self, x_dim: int, delta_dim: int, layer_n: int,
                 edit_bias: bool = True, eps: float = 1e-5, tile_rows=None):
        self.x_dim = x_dim
        self.delta_dim = delta_dim
        self.model_dim = x_dim + delta_dim
        self.layer_n = layer_n
        self.edit_bias = edit_bias
        self.eps = eps
        self.tile_rows = tile_rows   # None -> auto-budgeted against device VMEM
        # Deterministic LayerNorm parameters (PyTorch default init).
        self.gamma = jnp.ones((1, self.model_dim), jnp.float32)
        self.beta = jnp.zeros((1, self.model_dim), jnp.float32)

    def set_past_reps(self):
        return [jnp.zeros((1, 0, self.model_dim), jnp.float32)
                for _ in range(self.layer_n)]

    def _vmem_limit_bytes(self):
        cap = 64 << 20  # conservative fallback (v7x per-core VMEM)
        try:
            cap = int(pltpu.get_tpu_info().vmem_capacity_bytes)
        except Exception:
            pass
        # ~3/4 of physical VMEM (~48 MiB on v7x, ~96 MiB on v5e/v6e), leaving room
        # for Mosaic internal scratch / semaphores.
        return int(max(32 << 20, min((cap * 3) // 4, 112 << 20)))

    def _pick_tile_rows(self, L, x_bytes, vmem_limit):
        """Byte-budgeted row tile, using the lane-padded width round_up(D, 128)."""
        if self.tile_rows is not None:
            tl = int(self.tile_rows)
            return L if tl >= L else max(8, (tl // 8) * 8)
        d_pad = _round_up(self.model_dim, 128)
        acc_bytes = (_round_up(self.x_dim, 8) + 8) * _round_up(self.delta_dim, 128) * 4
        fixed = 3 * acc_bytes + 4 * d_pad * 4          # acc scratch + dw/db out bufs + gamma/beta
        budget = max(vmem_limit - fixed - (8 << 20), 2 << 20)
        per_row = 2 * d_pad * x_bytes + 2 * d_pad * 4  # x in (double buf) + xn out f32 (double buf)
        tl = budget // per_row
        if tl >= L:
            return L
        return max(8, int((tl // 8) * 8))

    def __call__(self, x, edit_lens, mode, past_reps):
        del mode  # only forwarded to the DAFNetModel stub
        if past_reps is None:
            past_reps = self.set_past_reps()

        L, D = x.shape
        assert D == self.model_dim
        n_edits = edit_lens.shape[0]

        # --- DAFNetModel stub (see TODO above): identity rep + unit scales ---
        update_scale = jnp.ones((n_edits,), jnp.float32)
        past_update_scale = jnp.float32(1.0)   # jnp scalar (no .item() host sync)

        # update_scale.repeat_interleave(edit_lens)/edit_lens.repeat_interleave(edit_lens)
        # folded per edit; the per-row expansion happens inside the kernel from SMEM.
        # (zero-length edits divide by zero, same as the PyTorch reference)
        per_edit_scale = update_scale / edit_lens.astype(jnp.float32)
        cum_lens = jnp.concatenate(
            [jnp.zeros((1,), jnp.int32), jnp.cumsum(edit_lens).astype(jnp.int32)])

        vmem_limit = self._vmem_limit_bytes()
        TL = self._pick_tile_rows(L, jnp.dtype(x.dtype).itemsize, vmem_limit)
        n_steps = pl.cdiv(L, TL)
        n_split = 2 if n_steps >= 2 else 1      # use both TensorCores on v7x
        sps = pl.cdiv(n_steps, n_split)         # row-tile steps per split

        def row_block(c, i):
            # Clamp fully out-of-range steps (n_split*sps > n_steps) onto the last
            # real tile; the kernel masks their contribution to zero.
            return (jnp.minimum(c * sps + i, n_steps - 1), 0)

        kernel = functools.partial(_grad_transformer_kernel,
                                   self.x_dim, self.eps, L, TL, n_edits, sps)

        xn, dw_part, db_part = pl.pallas_call(
            kernel,
            out_shape=(
                jax.ShapeDtypeStruct((L, D), jnp.float32),   # xn in f32: reused directly as reps
                jax.ShapeDtypeStruct((n_split, self.x_dim, self.delta_dim), jnp.float32),
                jax.ShapeDtypeStruct((n_split, 1, self.delta_dim), jnp.float32),
            ),
            grid_spec=pltpu.PrefetchScalarGridSpec(
                num_scalar_prefetch=0,
                grid=(n_split, sps),
                in_specs=[
                    pl.BlockSpec((TL, D), row_block),                   # x row tile
                    pl.BlockSpec((1, D), lambda c, i: (0, 0)),          # gamma
                    pl.BlockSpec((1, D), lambda c, i: (0, 0)),          # beta
                    pl.BlockSpec(memory_space=pltpu.MemorySpace.SMEM),  # cumulative edit lens
                    pl.BlockSpec(memory_space=pltpu.MemorySpace.SMEM),  # per-edit scale
                ],
                out_specs=(
                    pl.BlockSpec((TL, D), row_block),                                   # xn
                    pl.BlockSpec((1, self.x_dim, self.delta_dim), lambda c, i: (c, 0, 0)),
                    pl.BlockSpec((1, 1, self.delta_dim), lambda c, i: (c, 0, 0)),
                ),
                scratch_shapes=[
                    pltpu.VMEM((self.x_dim, self.delta_dim), jnp.float32),
                    pltpu.VMEM((1, self.delta_dim), jnp.float32),
                ],
            ),
            compiler_params=pltpu.CompilerParams(
                dimension_semantics=("parallel", "arbitrary"),
                vmem_limit_bytes=vmem_limit,
            ),
        )(x, self.gamma, self.beta, cum_lens, per_edit_scale)

        delta_weight = jnp.sum(dw_part, axis=0)                         # (x_dim, delta_dim)
        delta_bias = jnp.sum(db_part, axis=0)[0] if self.edit_bias else None

        # xn is already f32: one kernel-side write, no per-layer astype passes.
        new_reps = [jnp.concatenate([past_reps[i], xn[None]], axis=1)
                    for i in range(self.layer_n)]
        return delta_weight, delta_bias, past_update_scale, new_reps


def _reference(x, edit_lens, gamma, beta, x_dim, eps):
    """Pure-JAX reference mirroring the PyTorch forward (with the same DAFNet stub)."""
    L = x.shape[0]
    xf = x.astype(jnp.float32)
    mean = jnp.mean(xf, -1, keepdims=True)
    var = jnp.mean((xf - mean) ** 2, -1, keepdims=True)
    xn = (xf - mean) / jnp.sqrt(var + eps) * gamma + beta
    us = jnp.ones((edit_lens.shape[0],), jnp.float32)
    sc = (jnp.repeat(us, edit_lens, total_repeat_length=L)
          / jnp.repeat(edit_lens, edit_lens, total_repeat_length=L).astype(jnp.float32))
    x1 = xn[:, :x_dim]
    x2 = xn[:, x_dim:] * sc[:, None]
    dw = jnp.matmul(x1.T, x2, precision=jax.lax.Precision.HIGHEST)
    return xn, dw, x2.sum(0)


def _check_close(got, ref, tol, name):
    err = float(jnp.max(jnp.abs(got - ref)))
    mag = float(jnp.max(jnp.abs(ref))) + 1e-6
    assert err <= tol * mag, f"{name}: err={err} mag={mag} tol={tol}"


if __name__ == "__main__":
    key = jax.random.PRNGKey(0)
    x_dim, delta_dim, layer_n = 16, 16, 2
    D = x_dim + delta_dim

    # Case 1: small, single-tile path (L = now_edit_len = 8; grid (1,1)).
    k1, k2 = jax.random.split(key)
    L1 = 8
    x1 = jax.random.normal(k1, (L1, D), jnp.float32)
    lens1 = jnp.array([3, 5], jnp.int32)
    gt1 = GradientTransformerPallas(x_dim, delta_dim, layer_n, edit_bias=True)
    dw1, db1, pus1, reps1 = gt1(x1, lens1, mode=0, past_reps=None)
    jax.block_until_ready((dw1, db1, reps1))
    xn_r, dw_r, db_r = _reference(x1, lens1, gt1.gamma, gt1.beta, x_dim, gt1.eps)
    _check_close(dw1, dw_r, 1e-2, "dw (case1)")
    _check_close(db1, db_r, 1e-3, "db (case1)")
    _check_close(reps1[0][0], xn_r, 1e-3, "xn (case1)")
    assert dw1.shape == (x_dim, delta_dim)
    assert db1.shape == (delta_dim,)
    assert all(r.shape == (1, L1, D) for r in reps1)

    # Case 2: multi-tile + 2-way core split + trailing partial tile + clamped
    # out-of-range step (L=210, 96-row tiles -> 3 tiles over a (2,2) grid).
    L2 = 210
    x2 = jax.random.normal(k2, (L2, D), jnp.float32)
    lens2 = jnp.array([100, 110], jnp.int32)
    gt2 = GradientTransformerPallas(x_dim, delta_dim, layer_n, edit_bias=True,
                                    tile_rows=96)
    dw2, db2, pus2, reps2 = gt2(x2, lens2, mode=0, past_reps=None)
    jax.block_until_ready((dw2, db2, reps2))
    xn_r2, dw_r2, db_r2 = _reference(x2, lens2, gt2.gamma, gt2.beta, x_dim, gt2.eps)
    _check_close(dw2, dw_r2, 1e-2, "dw (case2)")
    _check_close(db2, db_r2, 1e-3, "db (case2)")
    _check_close(reps2[0][0], xn_r2, 1e-3, "xn (case2)")
    assert dw2.shape == (x_dim, delta_dim)
    assert db2.shape == (delta_dim,)
    assert all(r.shape == (1, L2, D) for r in reps2)

    print("KERNEL_OK")
</pallas_src>

<mosaic_0001>
module attributes {stable_mosaic.version = 11 : i64} {
  func.func @_grad_transformer_kernel(%arg0: i32, %arg1: i32, %arg2: memref<8x32xf32, #tpu.memory_space<vmem>>, %arg3: memref<1x32xf32, #tpu.memory_space<vmem>>, %arg4: memref<1x32xf32, #tpu.memory_space<vmem>>, %arg5: memref<3xi32, #tpu.memory_space<smem>>, %arg6: memref<2xf32, #tpu.memory_space<smem>>, %arg7: memref<8x32xf32, #tpu.memory_space<vmem>>, %arg8: memref<1x16x16xf32, #tpu.memory_space<vmem>>, %arg9: memref<1x1x16xf32, #tpu.memory_space<vmem>>, %arg10: memref<16x16xf32, #tpu.memory_space<vmem>>, %arg11: memref<1x16xf32, #tpu.memory_space<vmem>>) attributes {dimension_semantics = [#tpu.dimension_semantics<parallel>, #tpu.dimension_semantics<arbitrary>], iteration_bounds = array<i64: 1, 1>, scalar_prefetch = 0 : i64, scratch_operands = 2 : i64, tpu.core_type = #tpu.core_type<tc>, window_params = [{transform_indices = @transform_0, window_bounds = array<i64: 8, 32>}, {pipeline_mode = #tpu.pipeline_mode<synchronous>, transform_indices = @transform_1, window_bounds = array<i64: 1, 32>}, {pipeline_mode = #tpu.pipeline_mode<synchronous>, transform_indices = @transform_2, window_bounds = array<i64: 1, 32>}, {transform_indices = @transform_3, window_bounds = array<i64: 3>}, {transform_indices = @transform_4, window_bounds = array<i64: 2>}, {transform_indices = @transform_5, window_bounds = array<i64: 8, 32>}, {transform_indices = @transform_6, window_bounds = array<i64: 1, 16, 16>}, {transform_indices = @transform_7, window_bounds = array<i64: 1, 1, 16>}]} {
    %c0_i32 = arith.constant 0 : i32
    %0 = arith.cmpi eq, %arg1, %c0_i32 : i32
    %1 = arith.extui %0 : i1 to i32
    %c0_i32_0 = arith.constant 0 : i32
    %2 = arith.cmpi ne, %1, %c0_i32_0 : i32
    scf.if %2 {
      %cst_31 = arith.constant 0.000000e+00 : f32
      %76 = vector.broadcast %cst_31 : f32 to vector<16x16xf32>
      %c0_32 = arith.constant 0 : index
      %c0_33 = arith.constant 0 : index
      %77 = vector.load %arg10[%c0_32, %c0_33] : memref<16x16xf32, #tpu.memory_space<vmem>>, vector<16x16xf32>
      tpu.vector_store %arg10[%c0_32, %c0_33], %76 {strides = array<i32>} : memref<16x16xf32, #tpu.memory_space<vmem>>, vector<16x16xf32>,
      %cst_34 = arith.constant 0.000000e+00 : f32
      %78 = vector.broadcast %cst_34 : f32 to vector<1x16xf32>
      %c0_35 = arith.constant 0 : index
      %c0_36 = arith.constant 0 : index
      %79 = vector.load %arg11[%c0_35, %c0_36] : memref<1x16xf32, #tpu.memory_space<vmem>>, vector<1x16xf32>
      tpu.vector_store %arg11[%c0_35, %c0_36], %78 {strides = array<i32>} : memref<1x16xf32, #tpu.memory_space<vmem>>, vector<1x16xf32>,
    } else {
    }
    %c0 = arith.constant 0 : index
    %c0_1 = arith.constant 0 : index
    %3 = vector.load %arg2[%c0, %c0_1] : memref<8x32xf32, #tpu.memory_space<vmem>>, vector<8x32xf32>
    %cst = arith.constant dense<0.000000e+00> : vector<8xf32>
    %4 = vector.multi_reduction <add>, %3, %cst [1] : vector<8x32xf32> to vector<8xf32>
    %5 = vector.shape_cast %4 : vector<8xf32> to vector<8x1xf32>
    %cst_2 = arith.constant 3.125000e-02 : f32
    %6 = vector.broadcast %cst_2 : f32 to vector<8x1xf32>
    %7 = arith.mulf %5, %6 : vector<8x1xf32>
    %8 = vector.broadcast %7 : vector<8x1xf32> to vector<8x32xf32>
    %9 = arith.subf %3, %8 : vector<8x32xf32>
    %10 = arith.mulf %9, %9 : vector<8x32xf32>
    %cst_3 = arith.constant dense<0.000000e+00> : vector<8xf32>
    %11 = vector.multi_reduction <add>, %10, %cst_3 [1] : vector<8x32xf32> to vector<8xf32>
    %12 = vector.shape_cast %11 : vector<8xf32> to vector<8x1xf32>
    %cst_4 = arith.constant 3.125000e-02 : f32
    %13 = vector.broadcast %cst_4 : f32 to vector<8x1xf32>
    %14 = arith.mulf %12, %13 : vector<8x1xf32>
    %cst_5 = arith.constant 9.99999974E-6 : f32
    %15 = vector.broadcast %cst_5 : f32 to vector<8x1xf32>
    %16 = arith.addf %14, %15 : vector<8x1xf32>
    %17 = math.rsqrt %16 : vector<8x1xf32>
    %18 = vector.broadcast %17 : vector<8x1xf32> to vector<8x32xf32>
    %19 = arith.mulf %9, %18 : vector<8x32xf32>
    %c0_6 = arith.constant 0 : index
    %c0_7 = arith.constant 0 : index
    %20 = vector.load %arg3[%c0_6, %c0_7] : memref<1x32xf32, #tpu.memory_space<vmem>>, vector<1x32xf32>
    %21 = vector.broadcast %20 : vector<1x32xf32> to vector<8x32xf32>
    %22 = arith.mulf %19, %21 : vector<8x32xf32>
    %c0_8 = arith.constant 0 : index
    %c0_9 = arith.constant 0 : index
    %23 = vector.load %arg4[%c0_8, %c0_9] : memref<1x32xf32, #tpu.memory_space<vmem>>, vector<1x32xf32>
    %24 = vector.broadcast %23 : vector<1x32xf32> to vector<8x32xf32>
    %25 = arith.addf %22, %24 : vector<8x32xf32>
    %c0_10 = arith.constant 0 : index
    %c0_11 = arith.constant 0 : index
    %26 = vector.load %arg7[%c0_10, %c0_11] : memref<8x32xf32, #tpu.memory_space<vmem>>, vector<8x32xf32>
    tpu.vector_store %arg7[%c0_10, %c0_11], %25 {strides = array<i32>} : memref<8x32xf32, #tpu.memory_space<vmem>>, vector<8x32xf32>,
    %c1_i32 = arith.constant 1 : i32
    %27 = arith.muli %arg0, %c1_i32 : i32
    %28 = arith.addi %27, %arg1 : i32
    %c8_i32 = arith.constant 8 : i32
    %29 = arith.muli %28, %c8_i32 : i32
    %30 = tpu.iota {dimensions = array<i32: 0>} : vector<8x1xi32>
    %31 = vector.broadcast %29 : i32 to vector<8x1xi32>
    %32 = arith.addi %31, %30 : vector<8x1xi32>
    %c8_i32_12 = arith.constant 8 : i32
    %33 = vector.broadcast %c8_i32_12 : i32 to vector<8x1xi32>
    %34 = arith.cmpi slt, %32, %33 : vector<8x1xi32>
    %cst_13 = arith.constant 0.000000e+00 : f32
    %35 = vector.shape_cast %34 : vector<8x1xi1> to vector<8x1xi1>
    %36 = vector.broadcast %35 : vector<8x1xi1> to vector<8x32xi1>
    %37 = vector.broadcast %cst_13 : f32 to vector<8x32xf32>
    %38 = arith.select %36, %25, %37 : vector<8x32xi1>, vector<8x32xf32>
    %cst_14 = arith.constant 0.000000e+00 : f32
    %39 = vector.broadcast %cst_14 : f32 to vector<8x1xf32>
    %c0_15 = arith.constant 0 : index
    %40 = memref.load %arg5[%c0_15] : memref<3xi32, #tpu.memory_space<smem>>
    %c1 = arith.constant 1 : index
    %41 = memref.load %arg5[%c1] : memref<3xi32, #tpu.memory_space<smem>>
    %42 = vector.broadcast %40 : i32 to vector<8x1xi32>
    %43 = arith.cmpi sge, %32, %42 : vector<8x1xi32>
    %44 = vector.broadcast %41 : i32 to vector<8x1xi32>
    %45 = arith.cmpi slt, %32, %44 : vector<8x1xi32>
    %46 = arith.andi %43, %45 : vector<8x1xi1>
    %c0_16 = arith.constant 0 : index
    %47 = memref.load %arg6[%c0_16] : memref<2xf32, #tpu.memory_space<smem>>
    %48 = vector.broadcast %47 : f32 to vector<8x1xf32>
    %49 = arith.select %46, %48, %39 : vector<8x1xi1>, vector<8x1xf32>
    %c1_17 = arith.constant 1 : index
    %50 = memref.load %arg5[%c1_17] : memref<3xi32, #tpu.memory_space<smem>>
    %c2 = arith.constant 2 : index
    %51 = memref.load %arg5[%c2] : memref<3xi32, #tpu.memory_space<smem>>
    %52 = vector.broadcast %50 : i32 to vector<8x1xi32>
    %53 = arith.cmpi sge, %32, %52 : vector<8x1xi32>
    %54 = vector.broadcast %51 : i32 to vector<8x1xi32>
    %55 = arith.cmpi slt, %32, %54 : vector<8x1xi32>
    %56 = arith.andi %53, %55 : vector<8x1xi1>
    %c1_18 = arith.constant 1 : index
    %57 = memref.load %arg6[%c1_18] : memref<2xf32, #tpu.memory_space<smem>>
    %58 = vector.broadcast %57 : f32 to vector<8x1xf32>
    %59 = arith.select %56, %58, %49 : vector<8x1xi1>, vector<8x1xf32>
    %60 = vector.extract_strided_slice %38 {offsets = [0, 0], sizes = [8, 16], strides = [1, 1]} : vector<8x32xf32> to vector<8x16xf32>
    %61 = vector.extract_strided_slice %38 {offsets = [0, 16], sizes = [8, 16], strides = [1, 1]} : vector<8x32xf32> to vector<8x16xf32>
    %62 = vector.broadcast %59 : vector<8x1xf32> to vector<8x16xf32>
    %63 = arith.mulf %61, %62 : vector<8x16xf32>
    %c0_19 = arith.constant 0 : index
    %c0_20 = arith.constant 0 : index
    %64 = vector.load %arg10[%c0_19, %c0_20] : memref<16x16xf32, #tpu.memory_space<vmem>>, vector<16x16xf32>
    %cst_21 = arith.constant dense<0.000000e+00> : vector<16x16xf32>
    %65 = tpu.matmul %60, %63, %cst_21 {dimension_numbers = #tpu.dot_dimension_numbers<[0], [0], [1], [1], [0, 1, 1, 1], [], []>} : vector<8x16xf32>, vector<8x16xf32>, vector<16x16xf32> -> vector<16x16xf32>
    %66 = arith.addf %64, %65 : vector<16x16xf32>
    %c0_22 = arith.constant 0 : index
    %c0_23 = arith.constant 0 : index
    %67 = vector.load %arg10[%c0_22, %c0_23] : memref<16x16xf32, #tpu.memory_space<vmem>>, vector<16x16xf32>
    tpu.vector_store %arg10[%c0_22, %c0_23], %66 {strides = array<i32>} : memref<16x16xf32, #tpu.memory_space<vmem>>, vector<16x16xf32>,
    %c0_24 = arith.constant 0 : index
    %c0_25 = arith.constant 0 : index
    %68 = vector.load %arg11[%c0_24, %c0_25] : memref<1x16xf32, #tpu.memory_space<vmem>>, vector<1x16xf32>
    %cst_26 = arith.constant dense<0.000000e+00> : vector<16xf32>
    %69 = vector.multi_reduction <add>, %63, %cst_26 [0] : vector<8x16xf32> to vector<16xf32>
    %70 = vector.shape_cast %69 : vector<16xf32> to vector<1x16xf32>
    %71 = arith.addf %68, %70 : vector<1x16xf32>
    %c0_27 = arith.constant 0 : index
    %c0_28 = arith.constant 0 : index
    %72 = vector.load %arg11[%c0_27, %c0_28] : memref<1x16xf32, #tpu.memory_space<vmem>>, vector<1x16xf32>
    tpu.vector_store %arg11[%c0_27, %c0_28], %71 {strides = array<i32>} : memref<1x16xf32, #tpu.memory_space<vmem>>, vector<1x16xf32>,
    %c0_i32_29 = arith.constant 0 : i32
    %73 = arith.cmpi eq, %arg1, %c0_i32_29 : i32
    %74 = arith.extui %73 : i1 to i32
    %c0_i32_30 = arith.constant 0 : i32
    %75 = arith.cmpi ne, %74, %c0_i32_30 : i32
    scf.if %75 {
      %c0_31 = arith.constant 0 : index
      %c0_32 = arith.constant 0 : index
      %76 = vector.load %arg10[%c0_31, %c0_32] : memref<16x16xf32, #tpu.memory_space<vmem>>, vector<16x16xf32>
      %77 = vector.shape_cast %76 : vector<16x16xf32> to vector<1x16x16xf32>
      %c0_33 = arith.constant 0 : index
      %c0_34 = arith.constant 0 : index
      %c0_35 = arith.constant 0 : index
      %78 = vector.load %arg8[%c0_33, %c0_34, %c0_35] : memref<1x16x16xf32, #tpu.memory_space<vmem>>, vector<1x16x16xf32>
      tpu.vector_store %arg8[%c0_33, %c0_34, %c0_35], %77 {strides = array<i32>} : memref<1x16x16xf32, #tpu.memory_space<vmem>>, vector<1x16x16xf32>,
      %c0_36 = arith.constant 0 : index
      %c0_37 = arith.constant 0 : index
      %79 = vector.load %arg11[%c0_36, %c0_37] : memref<1x16xf32, #tpu.memory_space<vmem>>, vector<1x16xf32>
      %80 = vector.shape_cast %79 : vector<1x16xf32> to vector<1x1x16xf32>
      %c0_38 = arith.constant 0 : index
      %c0_39 = arith.constant 0 : index
      %c0_40 = arith.constant 0 : index
      %81 = vector.load %arg9[%c0_38, %c0_39, %c0_40] : memref<1x1x16xf32, #tpu.memory_space<vmem>>, vector<1x1x16xf32>
      tpu.vector_store %arg9[%c0_38, %c0_39, %c0_40], %80 {strides = array<i32>} : memref<1x1x16xf32, #tpu.memory_space<vmem>>, vector<1x1x16xf32>,
    } else {
    }
    return
  }
  func.func @transform_0(%arg0: i32, %arg1: i32) -> (i32, i32) {
    %c1_i32 = arith.constant 1 : i32
    %0 = arith.muli %arg0, %c1_i32 : i32
    %1 = arith.addi %0, %arg1 : i32
    %c0_i32 = arith.constant 0 : i32
    %2 = arith.minsi %1, %c0_i32 : i32
    %c0_i32_0 = arith.constant 0 : i32
    %c0_i32_1 = arith.constant 0 : i32
    return %2, %c0_i32_0 : i32, i32
  }
  func.func @transform_1(%arg0: i32, %arg1: i32) -> (i32, i32) {
    %c0_i32 = arith.constant 0 : i32
    %c0_i32_0 = arith.constant 0 : i32
    %c0_i32_1 = arith.constant 0 : i32
    return %c0_i32, %c0_i32_0 : i32, i32
  }
  func.func @transform_2(%arg0: i32, %arg1: i32) -> (i32, i32) {
    %c0_i32 = arith.constant 0 : i32
    %c0_i32_0 = arith.constant 0 : i32
    %c0_i32_1 = arith.constant 0 : i32
    return %c0_i32, %c0_i32_0 : i32, i32
  }
  func.func @transform_3(%arg0: i32, %arg1: i32) -> i32 {
    %c0_i32 = arith.constant 0 : i32
    %c0_i32_0 = arith.constant 0 : i32
    return %c0_i32 : i32
  }
  func.func @transform_4(%arg0: i32, %arg1: i32) -> i32 {
    %c0_i32 = arith.constant 0 : i32
    %c0_i32_0 = arith.constant 0 : i32
    return %c0_i32 : i32
  }
  func.func @transform_5(%arg0: i32, %arg1: i32) -> (i32, i32) {
    %c1_i32 = arith.constant 1 : i32
    %0 = arith.muli %arg0, %c1_i32 : i32
    %1 = arith.addi %0, %arg1 : i32
    %c0_i32 = arith.constant 0 : i32
    %2 = arith.minsi %1, %c0_i32 : i32
    %c0_i32_0 = arith.constant 0 : i32
    %c0_i32_1 = arith.constant 0 : i32
    return %2, %c0_i32_0 : i32, i32
  }
  func.func @transform_6(%arg0: i32, %arg1: i32) -> (i32, i32, i32) {
    %c0_i32 = arith.constant 0 : i32
    %c0_i32_0 = arith.constant 0 : i32
    %c0_i32_1 = arith.constant 0 : i32
    return %arg0, %c0_i32, %c0_i32_0 : i32, i32, i32
  }
  func.func @transform_7(%arg0: i32, %arg1: i32) -> (i32, i32, i32) {
    %c0_i32 = arith.constant 0 : i32
    %c0_i32_0 = arith.constant 0 : i32
    %c0_i32_1 = arith.constant 0 : i32
    return %arg0, %c0_i32, %c0_i32_0 : i32, i32, i32
  }
}

</mosaic_0001>

<llo_original>
// kernel: tpu_custom_call.1
$region0: #{tpu_custom_call.1}
  #allocation0 [shape = 'u32[]', space=smem, size = 0x4, offset = 0x4, fixed_abs, tag = 'smem constant byte address 0x4 - core index']
  #allocation1 [shape = 'u32[72,128]{1,0:T(1,128)}', space=vmem, size = 0x9000, scoped, tag = 'internal scratch']
  #allocation2 [shape = 'f32[16,16]{1,0:T(8,128)}', space=vmem, size = 0x2000, scoped, tag = 'scratch operand']
  #allocation3 [shape = 'f32[1,16]{1,0:T(1,128)}', space=vmem, size = 0x200, scoped, tag = 'scratch operand']
  %s0 = inlined_call_operand.hbm [shape: f32[8,32], index: 0, kind: input, shape index: {}]
  %s1 = inlined_call_operand.hbm [shape: f32[1,32], index: 1, kind: input, shape index: {}]
  %s2 = inlined_call_operand.vmem [shape: f32[1,32], index: 2, kind: input, shape index: {}]
  %s3 = inlined_call_operand.vmem [shape: s32[3], index: 3, kind: input, shape index: {}]
  %s4 = inlined_call_operand.vmem [shape: f32[2], index: 4, kind: input, shape index: {}]
  %s5 = inlined_call_operand.hbm [shape: f32[8,32], index: 5, kind: output, shape index: {0}]
  %s6 = inlined_call_operand.hbm [shape: f32[1,16,16], index: 6, kind: output, shape index: {1}]
  %s7 = inlined_call_operand.hbm [shape: f32[1,1,16], index: 7, kind: output, shape index: {2}]
  %8 = xla_tuple %s5, %s6, %s7
  %s9 = sld [smem:[#allocation0]]
  $region70: #{tpu_custom_call.1} parent=0
    _
  %s11 = ssub.s32 1, %s9
  %s12 = scalar_select 0, %s11, %s9
  $region1: #{tpu_custom_call.1} parent=0
    #allocation4 [shape = 'u8[4096]{0}', space=vmem, size = 0x1000, scoped, tag = 'input window, operand 0, single buffered']
    #allocation5 [shape = 's32[1]{0}', space=sflag, size = 0x4, scoped, tag = 'scoped memory for tpu_custom_call.1']
    #allocation6 [shape = 's32[1]{0}', space=sflag, size = 0x4, scoped, tag = 'scoped memory for tpu_custom_call.1']
    #allocation7 [shape = 's32[1]{0}', space=sflag, size = 0x4, scoped, tag = 'scoped memory for tpu_custom_call.1']
    #allocation8 [shape = 'u8[512]{0}', space=vmem, size = 0x400, scoped, tag = 'input window, operand 1, single buffered']
    #allocation9 [shape = 's32[1]{0}', space=sflag, size = 0x4, scoped, tag = 'scoped memory for tpu_custom_call.1']
    #allocation10 [shape = 'u8[512]{0}', space=smem, size = 0x200, scoped, tag = 'input window, operand 3, single buffered']
    #allocation11 [shape = 'u8[512]{0}', space=smem, size = 0x200, scoped, tag = 'input window, operand 4, single buffered']
    #allocation12 [shape = 's32[1]{0}', space=sflag, size = 0x4, scoped, tag = 'scoped memory for tpu_custom_call.1']
    #allocation13 [shape = 'u8[4096]{0}', space=vmem, size = 0x1000, scoped, tag = 'output window, operand 0, single buffered']
    #allocation14 [shape = 'u8[8192]{0}', space=vmem, size = 0x2000, scoped, tag = 'output window, operand 1, single buffered']
    #allocation15 [shape = 's32[1]{0}', space=sflag, size = 0x4, scoped, tag = 'scoped memory for tpu_custom_call.1']
    #allocation16 [shape = 'u8[512]{0}', space=vmem, size = 0x400, scoped, tag = 'output window, operand 2, single buffered']
    %13 = vsyncpa [#allocation5], 0
    %14 = vsyncpa [#allocation9], 0
    %15 = vsyncpa [#allocation7], 0
    %16 = vsyncpa [#allocation12], 0
    %17 = vsyncpa [#allocation6], 0
    %18 = vsyncpa [#allocation15], 0
    // Predicated region
    $region2: #{tpu_custom_call.1} parent=1 // pred_check
      _
    $region3: #{tpu_custom_call.1} parent=1 // pred_check_branch
      %20 = sbr.rel (0) target = $region5
    $region4: #{tpu_custom_call.1} parent=1 // pred_region
      %s21 = sadd.s32 0, 0
      %p22 = scmp.lt.s32.totalorder %s21, 0
      %s23 = scalar_select %p22, %s21, 0
      %25 = vsyncadd [#allocation5], 0
      %s26 = smul.addr %s23, 8
      %s27 = scalar_lea.hbm %s0, %s26
      %s29 = sshll.u32 %s27, 4
      %s30 = int_to_ptr.hbm [resolvable:$true] %s29
      %s31 = sshll.u32 [#allocation4], 4
      %s32 = int_to_ptr.vmem [resolvable:$true] %s31
      %34 = dma.hbm_to_vmem [thread:$0]  %s30, 128, %s32, [#allocation5]
    $region5: #{tpu_custom_call.1} parent=1 // pred_fallthru
      _
    // Predicated region
    $region6: #{tpu_custom_call.1} parent=1 // pred_check
      _
    $region7: #{tpu_custom_call.1} parent=1 // pred_check_branch
      %36 = sbr.rel (0) target = $region9
    $region8: #{tpu_custom_call.1} parent=1 // pred_region
      %38 = vsyncadd [#allocation9], 0
      %s40 = sshll.u32 %s1, 4
      %s41 = int_to_ptr.hbm [resolvable:$true] %s40
      %s42 = sshll.u32 [#allocation8], 4
      %s43 = int_to_ptr.vmem [resolvable:$true] %s42
      %45 = dma.hbm_to_vmem [thread:$0]  %s41, 16, %s43, [#allocation9]
    $region9: #{tpu_custom_call.1} parent=1 // pred_fallthru
      _
    // Predicated region
    $region10: #{tpu_custom_call.1} parent=1 // pred_check
      _
    $region11: #{tpu_custom_call.1} parent=1 // pred_check_branch
      %47 = sbr.rel (0) target = $region13
    $region12: #{tpu_custom_call.1} parent=1 // pred_region
      _
    $region13: #{tpu_custom_call.1} parent=1 // pred_fallthru
      _
    // Predicated region
    $region14: #{tpu_custom_call.1} parent=1 // pred_check
      _
    $region15: #{tpu_custom_call.1} parent=1 // pred_check_branch
      %49 = sbr.rel (0) target = $region17
    $region16: #{tpu_custom_call.1} parent=1 // pred_region
      %51 = vsyncadd [#allocation7], 0
      %s53 = sshll.u32 %s3, 4
      %s54 = int_to_ptr.vmem [resolvable:$true] %s53
      %56 = dma.vmem_to_smem %s54, 16, [#allocation10], [#allocation7]
    $region17: #{tpu_custom_call.1} parent=1 // pred_fallthru
      _
    // Predicated region
    $region18: #{tpu_custom_call.1} parent=1 // pred_check
      _
    $region19: #{tpu_custom_call.1} parent=1 // pred_check_branch
      %58 = sbr.rel (0) target = $region21
    $region20: #{tpu_custom_call.1} parent=1 // pred_region
      %60 = vsyncadd [#allocation12], 0
      %s62 = sshll.u32 %s4, 4
      %s63 = int_to_ptr.vmem [resolvable:$true] %s62
      %65 = dma.vmem_to_smem %s63, 16, [#allocation11], [#allocation12]
    $region21: #{tpu_custom_call.1} parent=1 // pred_fallthru
      _
    // Predicated region
    $region22: #{tpu_custom_call.1} parent=1 // pred_check
      _
    $region23: #{tpu_custom_call.1} parent=1 // pred_check_branch
      %67 = sbr.rel (0) target = $region25
    $region24: #{tpu_custom_call.1} parent=1 // pred_region
      %69 = dma.done [#allocation5], 128
    $region25: #{tpu_custom_call.1} parent=1 // pred_fallthru
      _
    // Predicated region
    $region26: #{tpu_custom_call.1} parent=1 // pred_check
      _
    $region27: #{tpu_custom_call.1} parent=1 // pred_check_branch
      %71 = sbr.rel (0) target = $region29
    $region28: #{tpu_custom_call.1} parent=1 // pred_region
      %73 = dma.done [#allocation9], 16
    $region29: #{tpu_custom_call.1} parent=1 // pred_fallthru
      _
    // Predicated region
    $region30: #{tpu_custom_call.1} parent=1 // pred_check
      _
    $region31: #{tpu_custom_call.1} parent=1 // pred_check_branch
      %75 = sbr.rel (0) target = $region33
    $region32: #{tpu_custom_call.1} parent=1 // pred_region
      %77 = dma.done [#allocation7], 16
    $region33: #{tpu_custom_call.1} parent=1 // pred_fallthru
      _
    // Predicated region
    $region34: #{tpu_custom_call.1} parent=1 // pred_check
      _
    $region35: #{tpu_custom_call.1} parent=1 // pred_check_branch
      %79 = sbr.rel (0) target = $region37
    $region36: #{tpu_custom_call.1} parent=1 // pred_region
      %81 = dma.done [#allocation12], 16
    $region37: #{tpu_custom_call.1} parent=1 // pred_fallthru
      _
    %82 = sfence
    %s83 = sadd.s32 0, 0
    %p84 = scmp.lt.s32.totalorder %s83, 0
    %s85 = scalar_select %p84, %s83, 0
    %s86 = sadd.s32 0, 0
    %p87 = scmp.lt.s32.totalorder %s86, 0
    %s88 = scalar_select %p87, %s86, 0
    %p89 = scmp.eq.s32.totalorder 0, 0
    // Predicated region
    $region38: #{tpu_custom_call.1} parent=1 // pred_check
      %p90 = pneg %p89
    $region39: #{tpu_custom_call.1} parent=1 // pred_check_branch
      %92 = sbr.rel (%p90) target = $region41
    $region40: #{tpu_custom_call.1} parent=1 // pred_region
      %vm93 = vcmask 130048
      %94 = vst.msk [vmem:[#allocation2] sm:$0xff] %vm93, 0.0
      %95 = vst.msk [vmem:[#allocation2 + $0x8] sm:$0xff] %vm93, 0.0
      %vm96 = vcmask 122880
      %97 = vst.msk [vmem:[#allocation3] sm:$0x1] %vm96, 0.0
    $region41: #{tpu_custom_call.1} parent=1 // pred_fallthru
      _
    %v98 = vld [vmem:[#allocation4] sm:$0xff]
    %vm99 = vcmask 261120
    %v100 = vsel %vm99, %v98, 0.0
    %101 = vadd.xlane.f32.xlu0 %v100
    %v102 = vpop.xlane.xlu0 %101
    %v103 = vmul.f32 %v102, 0.03125
    %v104 = vsub.f32 %v98, %v103
    %v105 = vmul.f32 %v104, %v104
    %v106 = vsel %vm99, %v105, 0.0
    %107 = vadd.xlane.f32.xlu0 %v106
    %v108 = vpop.xlane.xlu0 %107
    %v109 = vmul.f32 %v108, 0.03125
    %v110 = vadd.f32 %v109, 1e-05
    %v111 = vrsqrt.pop %v110
    %v112 = vmul.f32 %v111, %v110
    %v113 = vmul.f32 %v112, %v111
    %v114 = vmul.f32 0.5, %v113
    %v115 = vsub.f32 1.5, %v114
    %v116 = vmul.f32 %v111, %v115
    %vm117 = vweird.f32 %v110
    %vm118 = vweird.f32 %v111
    %vm119 = vmor %vm117, %vm118
    %v120 = vsel %vm119, %v111, %v116
    %v121 = vmul.f32 %v104, %v120
    %v122 = vld [vmem:[#allocation8] sm:$0x1]
    %v124 = vperm.slane %v122, 0
    %v126 = vmul.f32 %v121, %v124
    %v127 = vld [vmem:[%s2] sm:$0x1]
    %v129 = vperm.slane %v127, 0
    %v131 = vadd.f32 %v126, %v129
    %132 = vst.msk [vmem:[#allocation13] sm:$0xff] %vm99, %v131
    %s133 = sadd.s32 0, 0
    %s134 = smul.u32 %s133, 8
    %v135 = vlaneseq
    %v136 = vshrl.u32 %v135, 7
    %v137 = vstv %s134
    %v138 = vadd.s32 %v137, %v136
    %vm139 = vcmp.lt.s32.totalorder %v138, 8
    %v140 = vsel %vm139, 1, 0
    %vm141 = vcmp.eq.s32.totalorder %v140, 1
    %v142 = vsel %vm141, %v131, 0.0
    %s143 = sld [smem:[#allocation10]]
    %s144 = sld [smem:[#allocation10 + $0x1]]
    %v145 = vstv %s143
    %vm146 = vcmp.ge.s32.totalorder %v138, %v145
    %v147 = vstv %s144
    %vm148 = vcmp.lt.s32.totalorder %v138, %v147
    %vm149 = vmand %vm146, %vm148
    %s150 = sld [smem:[#allocation11]]
    %v151 = vstv %s150
    %v152 = vsel %vm149, %v151, 0.0
    %s153 = sld [smem:[#allocation10 + $0x2]]
    %vm154 = vcmp.ge.s32.totalorder %v138, %v147
    %v155 = vstv %s153
    %vm156 = vcmp.lt.s32.totalorder %v138, %v155
    %vm157 = vmand %vm154, %vm156
    %s158 = sld [smem:[#allocation11 + $0x1]]
    %v159 = vstv %s158
    %v160 = vsel %vm157, %v159, %v152
    %v161 = vmul.f32 %v142, %v160
    %v162 = vld [vmem:[#allocation2] sm:$0xff]
    %v163 = vld [vmem:[#allocation2 + $0x8] sm:$0xff]
    %164 = vxpose.xlu0.b32.start [1/16] %v142, 128
    %165 = vxpose.xlu0.b32.cont [2/16] 0.0, 128
    %166 = vxpose.xlu0.b32.cont [3/16] 0.0, 128
    %167 = vxpose.xlu0.b32.cont [4/16] 0.0, 128
    %168 = vxpose.xlu0.b32.cont [5/16] 0.0, 128
    %169 = vxpose.xlu0.b32.cont [6/16] 0.0, 128
    %170 = vxpose.xlu0.b32.cont [7/16] 0.0, 128
    %171 = vxpose.xlu0.b32.cont [8/16] 0.0, 128
    %172 = vxpose.xlu0.b32.cont [9/16] 0.0, 128
    %173 = vxpose.xlu0.b32.cont [10/16] 0.0, 128
    %174 = vxpose.xlu0.b32.cont [11/16] 0.0, 128
    %175 = vxpose.xlu0.b32.cont [12/16] 0.0, 128
    %176 = vxpose.xlu0.b32.cont [13/16] 0.0, 128
    %177 = vxpose.xlu0.b32.cont [14/16] 0.0, 128
    %178 = vxpose.xlu0.b32.cont [15/16] 0.0, 128
    %179 = vxpose.xlu0.b32.end [16/16] 0.0, 128
    %v180 = vpop.trf.xlu0
    %v181 = vpop.trf.xlu0
    %v182 = vpop.trf.xlu0
    %v183 = vpop.trf.xlu0
    %v184 = vpop.trf.xlu0
    %v185 = vpop.trf.xlu0
    %v186 = vpop.trf.xlu0
    %v187 = vpop.trf.xlu0
    %v188 = vpop.trf.xlu0
    %v189 = vpop.trf.xlu0
    %v190 = vpop.trf.xlu0
    %v191 = vpop.trf.xlu0
    %v192 = vpop.trf.xlu0
    %v193 = vpop.trf.xlu0
    %v194 = vpop.trf.xlu0
    %v195 = vpop.trf.xlu0
    %197 = vrot.lane.b32.xlu0 %v161, 112
    %v198 = vpop.permute.xlu0 %197
    %vm200 = vcmask 64512
    %v202 = vsel %vm200, %v180, 0
    %v205 = vsel %vm200, %v181, 0
    %207 = vmatpush.msra.mxu0 0.0
    %208 = vmatpush.msra.mxu0 0.0
    %209 = vmatpush.msra.mxu0 0.0
    %210 = vmatpush.msra.mxu0 0.0
    %211 = vmatpush.msra.mxu0 0.0
    %212 = vmatpush.msra.mxu0 0.0
    %213 = vmatpush.msra.mxu0 0.0
    %214 = vmatpush.msra.mxu0 0.0
    %215 = vmatpush.msra.mxu0 0.0
    %216 = vmatpush.msra.mxu0 0.0
    %217 = vmatpush.msra.mxu0 0.0
    %218 = vmatpush.msra.mxu0 0.0
    %219 = vmatpush.msra.mxu0 0.0
    %220 = vmatpush.msra.mxu0 0.0
    %221 = vmatpush.msra.mxu0 0.0
    %222 = vmatpush.msra.mxu0 %v198
    %223 = vmatmul.f32.gmra.mxu0 %v202
    %v224 = vpop.f32.mrf.mxu0
    %v225 = vadd.f32 0.0, %v224
    %226 = vmatmul.f32.gmra.mxu0 %v205
    %v227 = vpop.f32.mrf.mxu0
    %v228 = vadd.f32 0.0, %v227
    %229 = vdwg.mxu0
    %v230 = vadd.f32 %v162, %v225
    %v231 = vadd.f32 %v163, %v228
    %vm232 = vcmask 130048
    %233 = vst.msk [vmem:[#allocation2] sm:$0xff] %vm232, %v230
    %234 = vst.msk [vmem:[#allocation2 + $0x8] sm:$0xff] %vm232, %v231
    %v235 = vld [vmem:[#allocation3] sm:$0x1]
    %vm236 = vcmask 261248
    %v237 = vsel %vm236, %v161, 0.0
    %v238 = vrot.slane %v237, 4
    %v239 = vadd.f32 %v237, %v238
    %v240 = vrot.slane %v239, 2
    %v241 = vadd.f32 %v239, %v240
    %v242 = vrot.slane %v241, 1
    %v243 = vadd.f32 %v241, %v242
    %245 = vrot.lane.b32.xlu0 %v243, 112
    %v246 = vpop.permute.xlu0 %245
    %v248 = vadd.f32 %v235, %v246
    %vm249 = vcmask 122880
    %250 = vst.msk [vmem:[#allocation3] sm:$0x1] %vm249, %v248
    // Predicated region
    $region42: #{tpu_custom_call.1} parent=1 // pred_check
      %p251 = pneg %p89
    $region43: #{tpu_custom_call.1} parent=1 // pred_check_branch
      %253 = sbr.rel (%p251) target = $region45
    $region44: #{tpu_custom_call.1} parent=1 // pred_region
      %v254 = vld [vmem:[#allocation2] sm:$0xff]
      %v255 = vld [vmem:[#allocation2 + $0x8] sm:$0xff]
      %256 = vst.msk [vmem:[#allocation14] sm:$0xff] %vm232, %v254
      %257 = vst.msk [vmem:[#allocation14 + $0x8] sm:$0xff] %vm232, %v255
      %v258 = vld [vmem:[#allocation3] sm:$0x1]
      %259 = vst.msk [vmem:[#allocation16] sm:$0x1] %vm249, %v258
    $region45: #{tpu_custom_call.1} parent=1 // pred_fallthru
      _
    // Predicated region
    $region46: #{tpu_custom_call.1} parent=1 // pred_check
      _
    $region47: #{tpu_custom_call.1} parent=1 // pred_check_branch
      %261 = sbr.rel (0) target = $region49
    $region48: #{tpu_custom_call.1} parent=1 // pred_region
      %s262 = sadd.s32 0, 0
      %p263 = scmp.lt.s32.totalorder %s262, 0
      %s264 = scalar_select %p263, %s262, 0
      %266 = vsyncadd [#allocation6], 0
      %s267 = smul.addr %s264, 8
      %s268 = scalar_lea.hbm %s5, %s267
      %s270 = sshll.u32 [#allocation13], 4
      %s271 = int_to_ptr.vmem [resolvable:$true] %s270
      %s272 = sshll.u32 %s268, 4
      %s273 = int_to_ptr.hbm [resolvable:$true] %s272
      %275 = dma.vmem_to_hbm [thread:$0]  %s271, 128, %s273, [#allocation6]
    $region49: #{tpu_custom_call.1} parent=1 // pred_fallthru
      _
    // Predicated region
    $region50: #{tpu_custom_call.1} parent=1 // pred_check
      _
    $region51: #{tpu_custom_call.1} parent=1 // pred_check_branch
      %277 = sbr.rel (0) target = $region53
    $region52: #{tpu_custom_call.1} parent=1 // pred_region
      %279 = vsyncadd [#allocation15], 0
      %s280 = sshll.u32 [#allocation14], 4
      %s281 = int_to_ptr.vmem [resolvable:$true] %s280
      %s282 = sshll.u32 %s6, 4
      %s283 = int_to_ptr.hbm [resolvable:$true] %s282
      %288 = dma.vmem_to_hbm [thread:$0]  %s281, 256, %s283, [#allocation15], 128, 128, 8
    $region53: #{tpu_custom_call.1} parent=1 // pred_fallthru
      _
    // Predicated region
    $region54: #{tpu_custom_call.1} parent=1 // pred_check
      _
    $region55: #{tpu_custom_call.1} parent=1 // pred_check_branch
      %290 = sbr.rel (0) target = $region57
    $region56: #{tpu_custom_call.1} parent=1 // pred_region
      %292 = vsyncadd [#allocation15], 0
      %s294 = sshll.u32 [#allocation16], 4
      %s295 = int_to_ptr.vmem [resolvable:$true] %s294
      %s296 = sshll.u32 %s7, 4
      %s297 = int_to_ptr.hbm [resolvable:$true] %s296
      %299 = dma.vmem_to_hbm [thread:$0]  %s295, 16, %s297, [#allocation15]
    $region57: #{tpu_custom_call.1} parent=1 // pred_fallthru
      _
    // Predicated region
    $region58: #{tpu_custom_call.1} parent=1 // pred_check
      _
    $region59: #{tpu_custom_call.1} parent=1 // pred_check_branch
      %301 = sbr.rel (0) target = $region61
    $region60: #{tpu_custom_call.1} parent=1 // pred_region
      %303 = dma.done [#allocation6], 128
    $region61: #{tpu_custom_call.1} parent=1 // pred_fallthru
      _
    // Predicated region
    $region62: #{tpu_custom_call.1} parent=1 // pred_check
      _
    $region63: #{tpu_custom_call.1} parent=1 // pred_check_branch
      %305 = sbr.rel (0) target = $region65
    $region64: #{tpu_custom_call.1} parent=1 // pred_region
      %307 = dma.done [#allocation15], 256
    $region65: #{tpu_custom_call.1} parent=1 // pred_fallthru
      _
    // Predicated region
    $region66: #{tpu_custom_call.1} parent=1 // pred_check
      _
    $region67: #{tpu_custom_call.1} parent=1 // pred_check_branch
      %309 = sbr.rel (0) target = $region69
    $region68: #{tpu_custom_call.1} parent=1 // pred_region
      %311 = dma.done [#allocation15], 16
    $region69: #{tpu_custom_call.1} parent=1 // pred_fallthru
      _
    %312 = vsyncpa [#allocation5], 1
    %313 = vsyncpa [#allocation9], 1
    %314 = vsyncpa [#allocation6], 1
    %315 = vsyncpa [#allocation15], 1
    %316 = vsyncpa [#allocation7], 1
    %317 = vsyncpa [#allocation12], 1

</llo_original>
